<compile_context>
chip_gen: v7x
topology: tpu7x:2x2x1
jax: 0.10.0
libtpu: 0.0.40
codegen_flags: <defaults>
</compile_context>

<pallas_src>
import jax
import jax.numpy as jnp
from jax.experimental import pallas as pl
from jax.experimental.pallas import tpu as pltpu

FEATURE_DIM = 512   # enforced by the module's asserts
MAX_TILE_B = 512    # ~1 MiB per f32 input tile -> ~85% of HBM roofline


def _eucl_loss_kernel(mod_ref, tgt_ref, out_ref):
    # mod_ref / tgt_ref: (TB, 512) VMEM tiles.
    # out_ref:           (1, 8, 128) VMEM block holding this tile's partial
    #                    sum, broadcast lane-dense (read back as out[:, 0, 0]).
    diff = mod_ref[...].astype(jnp.float32) - tgt_ref[...].astype(jnp.float32)
    sq = diff * diff
    row_sq_sum = jnp.sum(sq, axis=1, keepdims=True)          # (TB, 1)  XLU
    dists = jnp.sqrt(row_sq_sum)                              # (TB, 1)  EUP
    partial = jnp.sum(dists)                                  # scalar partial
    out_ref[...] = jnp.broadcast_to(partial, out_ref.shape).astype(jnp.float32)


def eucl_loss(avg_target_descriptions: jax.Array,
              mod_descriptions: jax.Array) -> jax.Array:
    """JAX/Pallas equivalent of EuclLoss.forward.

    PyTorch calls self.l2_loss(mod, avg_target), i.e. input=mod,
    target=avg_target, and divides by mod.shape[0].
    """
    assert avg_target_descriptions.ndim == 2
    assert mod_descriptions.ndim == 2
    assert avg_target_descriptions.shape[1] == FEATURE_DIM
    assert mod_descriptions.shape[1] == FEATURE_DIM
    assert avg_target_descriptions.shape[0] == mod_descriptions.shape[0]

    B = mod_descriptions.shape[0]

    # Pick a batch tile (multiple of 8, capped at MAX_TILE_B) and zero-pad the
    # batch so it divides evenly.  Zero-padded rows contribute exactly 0 to
    # the distance sum, so no masking is required in the kernel.
    tb = MAX_TILE_B if B >= MAX_TILE_B else ((B + 7) // 8) * 8
    b_padded = pl.cdiv(B, tb) * tb
    mod = mod_descriptions
    tgt = avg_target_descriptions
    if b_padded != B:
        pad = b_padded - B
        mod = jnp.pad(mod, ((0, pad), (0, 0)))
        tgt = jnp.pad(tgt, ((0, pad), (0, 0)))
    num_tiles = b_padded // tb

    itemsize = jnp.dtype(mod.dtype).itemsize
    cost = pl.CostEstimate(
        flops=3 * b_padded * FEATURE_DIM,            # sub, mul, reduce-add
        transcendentals=b_padded,                    # one sqrt per row
        bytes_accessed=2 * b_padded * FEATURE_DIM * itemsize
                       + num_tiles * 8 * 128 * 4,
    )

    partials = pl.pallas_call(
        _eucl_loss_kernel,
        out_shape=jax.ShapeDtypeStruct((num_tiles, 8, 128), jnp.float32),
        grid_spec=pltpu.PrefetchScalarGridSpec(
            num_scalar_prefetch=0,
            grid=(num_tiles,),
            in_specs=[
                pl.BlockSpec((tb, FEATURE_DIM), lambda i: (i, 0)),
                pl.BlockSpec((tb, FEATURE_DIM), lambda i: (i, 0)),
            ],
            out_specs=pl.BlockSpec((1, 8, 128), lambda i: (i, 0, 0)),
        ),
        compiler_params=pltpu.CompilerParams(
            dimension_semantics=("parallel",),
        ),
        cost_estimate=cost,
    )(mod, tgt)

    # Tiny host-side reduction of the per-tile partial sums, then normalize by
    # the ORIGINAL batch size (matches PyTorch's input.size(0)).
    return jnp.sum(partials[:, 0, 0]) / jnp.float32(B)


def eucl_loss_ref(avg_target_descriptions, mod_descriptions):
    diff = (mod_descriptions.astype(jnp.float32)
            - avg_target_descriptions.astype(jnp.float32))
    return (jnp.sum(jnp.sqrt(jnp.sum(diff * diff, axis=1)))
            / mod_descriptions.shape[0])


if __name__ == "__main__":
    key = jax.random.PRNGKey(0)
    k1, k2, k3, k4 = jax.random.split(key, 4)

    # Primary small-shape check (B=8, feature dim fixed at 512 by the module).
    B = 8
    avg_target = jax.random.normal(k1, (B, FEATURE_DIM), dtype=jnp.float32)
    mod_desc = jax.random.normal(k2, (B, FEATURE_DIM), dtype=jnp.float32)

    loss = eucl_loss(avg_target, mod_desc)
    jax.block_until_ready(loss)
    ref = eucl_loss_ref(avg_target, mod_desc)
    assert jnp.allclose(loss, ref, rtol=1e-5, atol=1e-5), (loss, ref)

    # Ragged-batch check (exercises the zero-padding path, B not multiple of 8).
    B2 = 13
    avg_target2 = jax.random.normal(k3, (B2, FEATURE_DIM), dtype=jnp.float32)
    mod_desc2 = jax.random.normal(k4, (B2, FEATURE_DIM), dtype=jnp.float32)
    loss2 = eucl_loss(avg_target2, mod_desc2)
    jax.block_until_ready(loss2)
    ref2 = eucl_loss_ref(avg_target2, mod_desc2)
    assert jnp.allclose(loss2, ref2, rtol=1e-5, atol=1e-5), (loss2, ref2)

    print("KERNEL_OK")
</pallas_src>

<mosaic_0001>
module attributes {stable_mosaic.version = 11 : i64} {
  func.func @_eucl_loss_kernel(%arg0: i32, %arg1: memref<8x512xf32, #tpu.memory_space<vmem>>, %arg2: memref<8x512xf32, #tpu.memory_space<vmem>>, %arg3: memref<1x8x128xf32, #tpu.memory_space<vmem>>) attributes {dimension_semantics = [#tpu.dimension_semantics<parallel>], iteration_bounds = array<i64: 1>, scalar_prefetch = 0 : i64, scratch_operands = 0 : i64, tpu.core_type = #tpu.core_type<tc>, window_params = [{transform_indices = @transform_0, window_bounds = array<i64: 8, 512>}, {transform_indices = @transform_1, window_bounds = array<i64: 8, 512>}, {transform_indices = @transform_2, window_bounds = array<i64: 1, 8, 128>}]} {
    %c0 = arith.constant 0 : index
    %c0_0 = arith.constant 0 : index
    %0 = vector.load %arg1[%c0, %c0_0] : memref<8x512xf32, #tpu.memory_space<vmem>>, vector<8x512xf32>
    %c0_1 = arith.constant 0 : index
    %c0_2 = arith.constant 0 : index
    %1 = vector.load %arg2[%c0_1, %c0_2] : memref<8x512xf32, #tpu.memory_space<vmem>>, vector<8x512xf32>
    %2 = arith.subf %0, %1 : vector<8x512xf32>
    %3 = arith.mulf %2, %2 : vector<8x512xf32>
    %cst = arith.constant dense<0.000000e+00> : vector<8xf32>
    %4 = vector.multi_reduction <add>, %3, %cst [1] : vector<8x512xf32> to vector<8xf32>
    %5 = vector.shape_cast %4 : vector<8xf32> to vector<8x1xf32>
    %6 = math.sqrt %5 : vector<8x1xf32>
    %7 = vector.shape_cast %6 : vector<8x1xf32> to vector<1x8x1xf32>
    %cst_3 = arith.constant dense<0.000000e+00> : vector<1xf32>
    %8 = vector.multi_reduction <add>, %7, %cst_3 [1, 2] : vector<1x8x1xf32> to vector<1xf32>
    %9 = vector.shape_cast %8 : vector<1xf32> to vector<1x1x1xf32>
    %10 = vector.extract %9[0, 0, 0] : f32 from vector<1x1x1xf32>
    %11 = vector.broadcast %10 : f32 to vector<1x8x128xf32>
    %c0_4 = arith.constant 0 : index
    %c0_5 = arith.constant 0 : index
    %c0_6 = arith.constant 0 : index
    %12 = vector.load %arg3[%c0_4, %c0_5, %c0_6] : memref<1x8x128xf32, #tpu.memory_space<vmem>>, vector<1x8x128xf32>
    tpu.vector_store %arg3[%c0_4, %c0_5, %c0_6], %11 {strides = array<i32>} : memref<1x8x128xf32, #tpu.memory_space<vmem>>, vector<1x8x128xf32>,
    return
  }
  func.func @transform_0(%arg0: i32) -> (i32, i32) {
    %c0_i32 = arith.constant 0 : i32
    %c0_i32_0 = arith.constant 0 : i32
    return %arg0, %c0_i32 : i32, i32
  }
  func.func @transform_1(%arg0: i32) -> (i32, i32) {
    %c0_i32 = arith.constant 0 : i32
    %c0_i32_0 = arith.constant 0 : i32
    return %arg0, %c0_i32 : i32, i32
  }
  func.func @transform_2(%arg0: i32) -> (i32, i32, i32) {
    %c0_i32 = arith.constant 0 : i32
    %c0_i32_0 = arith.constant 0 : i32
    %c0_i32_1 = arith.constant 0 : i32
    return %arg0, %c0_i32, %c0_i32_0 : i32, i32, i32
  }
}

</mosaic_0001>

<llo_original>
// kernel: tpu_custom_call.1
$region0: #{tpu_custom_call.1}
  #allocation0 [shape = 'u32[]', space=smem, size = 0x4, offset = 0x4, fixed_abs, tag = 'smem constant byte address 0x4 - core index']
  #allocation1 [shape = 'u32[144,128]{1,0:T(1,128)}', space=vmem, size = 0x12000, scoped, tag = 'internal scratch']
  %s0 = inlined_call_operand.hbm [shape: f32[8,512], index: 0, kind: input, shape index: {}]
  %s1 = inlined_call_operand.hbm [shape: f32[8,512], index: 1, kind: input, shape index: {}]
  %s2 = inlined_call_operand.hbm [shape: f32[1,8,128], index: 2, kind: output, shape index: {}]
  %s3 = sld [smem:[#allocation0]]
  $region26: #{tpu_custom_call.1} parent=0
    _
  %s5 = ssub.s32 1, %s3
  %s6 = scalar_select 0, %s5, %s3
  $region1: #{tpu_custom_call.1} parent=0
    #allocation2 [shape = 'u8[16384]{0}', space=vmem, size = 0x4000, scoped, tag = 'input window, operand 0, single buffered']
    #allocation3 [shape = 's32[1]{0}', space=sflag, size = 0x4, scoped, tag = 'scoped memory for tpu_custom_call.1']
    #allocation4 [shape = 's32[1]{0}', space=sflag, size = 0x4, scoped, tag = 'scoped memory for tpu_custom_call.1']
    #allocation5 [shape = 'u8[16384]{0}', space=vmem, size = 0x4000, scoped, tag = 'input window, operand 1, single buffered']
    #allocation6 [shape = 's32[1]{0}', space=sflag, size = 0x4, scoped, tag = 'scoped memory for tpu_custom_call.1']
    #allocation7 [shape = 'u8[4096]{0}', space=vmem, size = 0x1000, scoped, tag = 'output window, operand 0, single buffered']
    %7 = vsyncpa [#allocation3], 0
    %8 = vsyncpa [#allocation6], 0
    %9 = vsyncpa [#allocation4], 0
    // Predicated region
    $region2: #{tpu_custom_call.1} parent=1 // pred_check
      _
    $region3: #{tpu_custom_call.1} parent=1 // pred_check_branch
      %11 = sbr.rel (0) target = $region5
    $region4: #{tpu_custom_call.1} parent=1 // pred_region
      %s13 = ssub.s32 512, 512
      %14 = vsyncadd [#allocation3], %s13
      %s16 = sshll.u32 [#allocation2], 4
      %s17 = int_to_ptr.vmem [resolvable:$true] %s16
      %19 = dma.hbm_to_vmem [thread:$0]  %s0, 512, %s17, [#allocation3]
    $region5: #{tpu_custom_call.1} parent=1 // pred_fallthru
      _
    // Predicated region
    $region6: #{tpu_custom_call.1} parent=1 // pred_check
      _
    $region7: #{tpu_custom_call.1} parent=1 // pred_check_branch
      %21 = sbr.rel (0) target = $region9
    $region8: #{tpu_custom_call.1} parent=1 // pred_region
      %s23 = ssub.s32 512, 512
      %24 = vsyncadd [#allocation6], %s23
      %s26 = sshll.u32 [#allocation5], 4
      %s27 = int_to_ptr.vmem [resolvable:$true] %s26
      %29 = dma.hbm_to_vmem [thread:$0]  %s1, 512, %s27, [#allocation6]
    $region9: #{tpu_custom_call.1} parent=1 // pred_fallthru
      _
    // Predicated region
    $region10: #{tpu_custom_call.1} parent=1 // pred_check
      _
    $region11: #{tpu_custom_call.1} parent=1 // pred_check_branch
      %31 = sbr.rel (0) target = $region13
    $region12: #{tpu_custom_call.1} parent=1 // pred_region
      %32 = dma.done [#allocation3], 512
    $region13: #{tpu_custom_call.1} parent=1 // pred_fallthru
      _
    // Predicated region
    $region14: #{tpu_custom_call.1} parent=1 // pred_check
      _
    $region15: #{tpu_custom_call.1} parent=1 // pred_check_branch
      %34 = sbr.rel (0) target = $region17
    $region16: #{tpu_custom_call.1} parent=1 // pred_region
      %35 = dma.done [#allocation6], 512
    $region17: #{tpu_custom_call.1} parent=1 // pred_fallthru
      _
    %v36 = vld [vmem:[#allocation2] sm:$0xff]
    %v37 = vld [vmem:[#allocation2 + $0x8] sm:$0xff]
    %v38 = vld [vmem:[#allocation2 + $0x10] sm:$0xff]
    %v39 = vld [vmem:[#allocation2 + $0x18] sm:$0xff]
    %v40 = vld [vmem:[#allocation5] sm:$0xff]
    %v41 = vld [vmem:[#allocation5 + $0x8] sm:$0xff]
    %v42 = vld [vmem:[#allocation5 + $0x10] sm:$0xff]
    %v43 = vld [vmem:[#allocation5 + $0x18] sm:$0xff]
    %v44 = vsub.f32 %v36, %v40
    %v45 = vsub.f32 %v37, %v41
    %v46 = vsub.f32 %v38, %v42
    %v47 = vsub.f32 %v39, %v43
    %v48 = vmul.f32 %v44, %v44
    %v49 = vmul.f32 %v45, %v45
    %v50 = vmul.f32 %v46, %v46
    %v51 = vmul.f32 %v47, %v47
    %v52 = vadd.f32 %v48, %v49
    %v53 = vadd.f32 %v52, %v50
    %v54 = vadd.f32 %v53, %v51
    %55 = vadd.xlane.f32.xlu0 %v54
    %v56 = vpop.xlane.xlu0 %55
    %v57 = vrsqrt.pop %v56
    %v58 = vmul.f32 %v56, %v57
    %vm59 = vcmp.eq.f32.partialorder %v56, inf
    %v60 = vsel %vm59, %v56, %v58
    %vm61 = vcmp.eq.f32.partialorder %v56, 0.0
    %v62 = vand.u32 %v56, 2147483648
    %v63 = vsel %vm61, %v62, %v60
    %vm64 = vcmask 7168
    %v65 = vsel %vm64, %v63, 0.0
    %66 = vadd.xlane.f32.xlu0 %v65
    %v67 = vpop.xlane.xlu0 %66
    %v68 = vrot.slane %v67, 4
    %v69 = vadd.f32 %v67, %v68
    %v70 = vrot.slane %v69, 2
    %v71 = vadd.f32 %v69, %v70
    %v72 = vrot.slane %v71, 1
    %v73 = vadd.f32 %v71, %v72
    %s74 = vtos %v73
    %v75 = vstv %s74
    %76 = vst [vmem:[#allocation7] sm:$0xff] %v75
    // Predicated region
    $region18: #{tpu_custom_call.1} parent=1 // pred_check
      _
    $region19: #{tpu_custom_call.1} parent=1 // pred_check_branch
      %78 = sbr.rel (0) target = $region21
    $region20: #{tpu_custom_call.1} parent=1 // pred_region
      %s80 = ssub.s32 128, 128
      %81 = vsyncadd [#allocation4], %s80
      %s83 = sshll.u32 [#allocation7], 4
      %s84 = int_to_ptr.vmem [resolvable:$true] %s83
      %86 = dma.vmem_to_hbm [thread:$0]  %s84, 128, %s2, [#allocation4]
    $region21: #{tpu_custom_call.1} parent=1 // pred_fallthru
      _
    // Predicated region
    $region22: #{tpu_custom_call.1} parent=1 // pred_check
      _
    $region23: #{tpu_custom_call.1} parent=1 // pred_check_branch
      %88 = sbr.rel (0) target = $region25
    $region24: #{tpu_custom_call.1} parent=1 // pred_region
      %89 = dma.done [#allocation4], 128
    $region25: #{tpu_custom_call.1} parent=1 // pred_fallthru
      _
    %90 = vsyncpa [#allocation3], 1
    %91 = vsyncpa [#allocation6], 1
    %92 = vsyncpa [#allocation4], 1

</llo_original>
